<compile_context>
chip_gen: v6e
topology: v6e:2x2x1
jax: 0.10.0
libtpu: 0.0.40
codegen_flags: <defaults>
</compile_context>

<pallas_src>
import functools

import jax
import jax.numpy as jnp
from jax import lax
from jax.experimental import pallas as pl
from jax.experimental.pallas import tpu as pltpu

LANES = 128
MAX_TILE_ROWS = 512          # 512 x 128 f32 = 256 KiB per pipelined tile
INT_MIN32 = -(2 ** 31)
INT_MAX32 = 2 ** 31 - 1
MASK31 = 0x7FFFFFFF


def _hookscale_kernel(x_ref, y_ref, key_ref, kbuf_ref, *,
                      gamma, n_valid, rows_per_tile, k_rank, needs_mask):
    t = pl.program_id(0)
    n_tiles = pl.num_programs(0)

    # ---- elementwise clamp: y = where(x < gamma, x, gamma) ----
    x = x_ref[...]
    y = jnp.where(x < gamma, x, gamma)
    y_ref[...] = y

    # ---- order-preserving float32 -> int32 keys, stashed in resident VMEM ----
    b = lax.bitcast_convert_type(y.astype(jnp.float32), jnp.int32)
    key = jnp.where(b < 0, b ^ MASK31, b)
    if needs_mask:
        # Push padded tail elements to +inf in key space (one-time cost).
        row = lax.broadcasted_iota(jnp.int32, key.shape, 0)
        col = lax.broadcasted_iota(jnp.int32, key.shape, 1)
        gidx = (t * rows_per_tile + row) * LANES + col
        key = jnp.where(gidx < n_valid, key, INT_MAX32)
    kbuf_ref[t] = key

    # ---- last grid step: exact k-th smallest key via 32-step radix select ----
    @pl.when(t == n_tiles - 1)
    def _():
        def bit_body(step, ans):
            shift = 31 - step
            bitval = jnp.where(shift == 31,
                               jnp.int32(INT_MIN32),
                               jnp.left_shift(jnp.int32(1), shift))
            trial = ans + bitval        # int32 wrap == +(1<<31) in biased space

            def chunk_body(c, cnt):
                k = kbuf_ref[c]         # (rows_per_tile, LANES) resident chunk
                return cnt + jnp.sum((k < trial).astype(jnp.int32))

            cnt = lax.fori_loop(0, n_tiles, chunk_body, jnp.int32(0))
            return jnp.where(cnt <= k_rank, trial, ans)

        ans = lax.fori_loop(0, 32, bit_body, jnp.int32(INT_MIN32))
        key_ref[0] = ans


def hook_scale_forward(x, scale, *, p=0.9995, gamma=0.999):
    """JAX/Pallas port of HookScale.forward (default channelnorm=False path).

    Returns (clamped_x, new_scale); the running `scale` buffer is threaded
    functionally (in -> out) instead of being mutated in place.
    """
    orig_shape = x.shape
    n = int(x.size)

    total_rows = -(-n // LANES)
    total_rows8 = ((total_rows + 7) // 8) * 8
    rows_per_tile = min(MAX_TILE_ROWS, total_rows8)
    n_tiles = -(-total_rows8 // rows_per_tile)
    padded_rows = n_tiles * rows_per_tile
    n_pad = padded_rows * LANES

    xf = x.reshape(-1)
    if n_pad != n:
        xf = jnp.pad(xf, (0, n_pad - n))
    x2d = xf.reshape(padded_rows, LANES)

    # Matches int(sort.shape[0] * p) - 1 in the torch code, guarded for tiny n.
    k_rank = min(max(int(n * p) - 1, 0), n - 1)

    kbuf_bytes = padded_rows * LANES * 4
    assert kbuf_bytes <= 40 * 2 ** 20, (
        "keys do not fit the VMEM-resident radix select; "
        "TODO(synk): multi-bit histogram streaming select for very large inputs")
    vmem_limit = max(32 * 2 ** 20, kbuf_bytes + 16 * 2 ** 20)

    y2d, key = pl.pallas_call(
        functools.partial(
            _hookscale_kernel,
            gamma=float(gamma),          # python float -> compile-time constant
            n_valid=n,
            rows_per_tile=rows_per_tile,
            k_rank=k_rank,
            needs_mask=(n_pad != n)),
        out_shape=(jax.ShapeDtypeStruct((padded_rows, LANES), x.dtype),
                   jax.ShapeDtypeStruct((1,), jnp.int32)),
        grid_spec=pltpu.PrefetchScalarGridSpec(
            num_scalar_prefetch=0,
            grid=(n_tiles,),
            in_specs=[pl.BlockSpec((rows_per_tile, LANES), lambda t: (t, 0))],
            out_specs=(
                pl.BlockSpec((rows_per_tile, LANES), lambda t: (t, 0)),
                pl.BlockSpec((1,), lambda t: (0,),
                             memory_space=pltpu.MemorySpace.SMEM),
            ),
            scratch_shapes=[
                pltpu.VMEM((n_tiles, rows_per_tile, LANES), jnp.int32)]),
        compiler_params=pltpu.CompilerParams(
            # Must stay sequential: the VMEM scratch carries keys across steps.
            dimension_semantics=("arbitrary",),
            vmem_limit_bytes=int(vmem_limit)),
    )(x2d)

    # Scalar glue: int32 key -> float value, fold in the running max.
    k = key[0]
    bits = jnp.where(k >= 0, k, k ^ MASK31)
    kth_val = lax.bitcast_convert_type(bits.astype(jnp.int32), jnp.float32)
    new_scale = jnp.maximum(kth_val, jnp.asarray(scale, jnp.float32))

    if n_pad != n:
        y = y2d.reshape(-1)[:n].reshape(orig_shape)
    else:
        y = y2d.reshape(orig_shape)
    return y, new_scale


if __name__ == "__main__":
    p, gamma = 0.9995, 0.999
    rng = jax.random.PRNGKey(0)
    x = jax.random.normal(rng, (2, 4, 16, 16), dtype=jnp.float32)  # NCHW
    scale0 = jnp.float32(0.0)                                      # buffer init

    y, new_scale = hook_scale_forward(x, scale0, p=p, gamma=gamma)
    jax.block_until_ready((y, new_scale))

    # Pure-JAX reference check of the PyTorch semantics.
    y_ref = jnp.where(x < gamma, x, jnp.float32(gamma))
    srt = jnp.sort(y_ref.reshape(-1))
    scale_ref = jnp.maximum(srt[int(x.size * p) - 1], scale0)
    assert jnp.allclose(y, y_ref), "clamp output mismatch"
    assert jnp.allclose(new_scale, scale_ref), "scale mismatch"

    print("KERNEL_OK")
</pallas_src>

<mosaic_0001>
module attributes {stable_mosaic.version = 11 : i64} {
  func.func @_hookscale_kernel(%arg0: i32, %arg1: memref<16x128xf32, #tpu.memory_space<vmem>>, %arg2: memref<16x128xf32, #tpu.memory_space<vmem>>, %arg3: memref<1xi32, #tpu.memory_space<smem>>, %arg4: memref<1x16x128xi32, #tpu.memory_space<vmem>>) attributes {dimension_semantics = [#tpu.dimension_semantics<arbitrary>], iteration_bounds = array<i64: 1>, scalar_prefetch = 0 : i64, scratch_operands = 1 : i64, tpu.core_type = #tpu.core_type<tc>, window_params = [{transform_indices = @transform_0, window_bounds = array<i64: 16, 128>}, {transform_indices = @transform_1, window_bounds = array<i64: 16, 128>}, {transform_indices = @transform_2, window_bounds = array<i64: 1>}]} {
    %c0 = arith.constant 0 : index
    %c0_0 = arith.constant 0 : index
    %0 = vector.load %arg1[%c0, %c0_0] : memref<16x128xf32, #tpu.memory_space<vmem>>, vector<16x128xf32>
    %cst = arith.constant 9.990000e-01 : f32
    %1 = vector.broadcast %cst : f32 to vector<16x128xf32>
    %2 = arith.cmpf olt, %0, %1 : vector<16x128xf32>
    %cst_1 = arith.constant 9.990000e-01 : f32
    %3 = vector.broadcast %cst_1 : f32 to vector<16x128xf32>
    %4 = arith.select %2, %0, %3 : vector<16x128xi1>, vector<16x128xf32>
    %c0_2 = arith.constant 0 : index
    %c0_3 = arith.constant 0 : index
    %5 = vector.load %arg2[%c0_2, %c0_3] : memref<16x128xf32, #tpu.memory_space<vmem>>, vector<16x128xf32>
    tpu.vector_store %arg2[%c0_2, %c0_3], %4 {strides = array<i32>} : memref<16x128xf32, #tpu.memory_space<vmem>>, vector<16x128xf32>,
    %6 = tpu.bitcast %4 : vector<16x128xf32> -> vector<16x128xi32>
    %c0_i32 = arith.constant 0 : i32
    %7 = vector.broadcast %c0_i32 : i32 to vector<16x128xi32>
    %8 = arith.cmpi slt, %6, %7 : vector<16x128xi32>
    %c2147483647_i32 = arith.constant 2147483647 : i32
    %9 = vector.broadcast %c2147483647_i32 : i32 to vector<16x128xi32>
    %10 = arith.xori %6, %9 : vector<16x128xi32>
    %11 = arith.select %8, %10, %6 : vector<16x128xi1>, vector<16x128xi32>
    %12 = arith.index_cast %arg0 : i32 to index
    %c0_4 = arith.constant 0 : index
    %c0_5 = arith.constant 0 : index
    %13 = vector.load %arg4[%12, %c0_4, %c0_5] : memref<1x16x128xi32, #tpu.memory_space<vmem>>, vector<1x16x128xi32>
    %14 = vector.shape_cast %13 : vector<1x16x128xi32> to vector<16x128xi32>
    %15 = vector.shape_cast %11 : vector<16x128xi32> to vector<1x16x128xi32>
    tpu.vector_store %arg4[%12, %c0_4, %c0_5], %15 {strides = array<i32>} : memref<1x16x128xi32, #tpu.memory_space<vmem>>, vector<1x16x128xi32>,
    %c0_i32_6 = arith.constant 0 : i32
    %16 = arith.cmpi eq, %arg0, %c0_i32_6 : i32
    %17 = arith.extui %16 : i1 to i32
    %c0_i32_7 = arith.constant 0 : i32
    %18 = arith.cmpi ne, %17, %c0_i32_7 : i32
    scf.if %18 {
      %c-2147483648_i32 = arith.constant -2147483648 : i32
      %c0_i32_8 = arith.constant 0 : i32
      %c32_i32 = arith.constant 32 : i32
      %19 = arith.addi %c0_i32_8, %c32_i32 : i32
      %c1_i32 = arith.constant 1 : i32
      %20 = scf.for %arg5 = %c0_i32_8 to %19 step %c1_i32 iter_args(%arg6 = %c-2147483648_i32) -> (i32)  : i32 {
        %c31_i32 = arith.constant 31 : i32
        %22 = arith.subi %c31_i32, %arg5 : i32
        %c31_i32_11 = arith.constant 31 : i32
        %23 = arith.cmpi eq, %22, %c31_i32_11 : i32
        %c1_i32_12 = arith.constant 1 : i32
        %24 = arith.shli %c1_i32_12, %22 : i32
        %c-2147483648_i32_13 = arith.constant -2147483648 : i32
        %25 = arith.select %23, %c-2147483648_i32_13, %24 : i32
        %26 = arith.addi %arg6, %25 : i32
        %c0_i32_14 = arith.constant 0 : i32
        %c0_i32_15 = arith.constant 0 : i32
        %27 = arith.index_cast %c0_i32_15 : i32 to index
        %c0_16 = arith.constant 0 : index
        %c0_17 = arith.constant 0 : index
        %28 = vector.load %arg4[%27, %c0_16, %c0_17] : memref<1x16x128xi32, #tpu.memory_space<vmem>>, vector<1x16x128xi32>
        %29 = vector.shape_cast %28 : vector<1x16x128xi32> to vector<16x128xi32>
        %30 = vector.broadcast %26 : i32 to vector<16x128xi32>
        %31 = arith.cmpi slt, %29, %30 : vector<16x128xi32>
        %32 = arith.extui %31 : vector<16x128xi1> to vector<16x128xi32>
        %33 = vector.shape_cast %32 : vector<16x128xi32> to vector<1x16x128xi32>
        %cst_18 = arith.constant dense<0> : vector<1xi32>
        %34 = vector.multi_reduction <add>, %33, %cst_18 [1, 2] : vector<1x16x128xi32> to vector<1xi32>
        %35 = vector.shape_cast %34 : vector<1xi32> to vector<1x1x1xi32>
        %36 = vector.extract %35[0, 0, 0] : i32 from vector<1x1x1xi32>
        %37 = arith.addi %c0_i32_14, %36 : i32
        %c1_i32_19 = arith.constant 1 : i32
        %c2045_i32 = arith.constant 2045 : i32
        %38 = arith.cmpi sle, %37, %c2045_i32 : i32
        %39 = arith.select %38, %26, %arg6 : i32
        scf.yield %39 : i32
      }
      %c32_i32_9 = arith.constant 32 : i32
      %c0_10 = arith.constant 0 : index
      %21 = memref.load %arg3[%c0_10] : memref<1xi32, #tpu.memory_space<smem>>
      memref.store %20, %arg3[%c0_10] : memref<1xi32, #tpu.memory_space<smem>>
    } else {
    }
    return
  }
  func.func @transform_0(%arg0: i32) -> (i32, i32) {
    %c0_i32 = arith.constant 0 : i32
    %c0_i32_0 = arith.constant 0 : i32
    return %arg0, %c0_i32 : i32, i32
  }
  func.func @transform_1(%arg0: i32) -> (i32, i32) {
    %c0_i32 = arith.constant 0 : i32
    %c0_i32_0 = arith.constant 0 : i32
    return %arg0, %c0_i32 : i32, i32
  }
  func.func @transform_2(%arg0: i32) -> i32 {
    %c0_i32 = arith.constant 0 : i32
    %c0_i32_0 = arith.constant 0 : i32
    return %c0_i32 : i32
  }
}

</mosaic_0001>

<llo_original>
// kernel: tpu_custom_call.1
$region0: #{tpu_custom_call.1}
  #allocation0 [shape = 'u32[]', space=smem, size = 0x4, offset = 0x4, fixed_abs, tag = 'smem constant byte address 0x4 - core index']
  #allocation1 [shape = 'u32[144,128]{1,0:T(1,128)}', space=vmem, size = 0x12000, scoped, tag = 'internal scratch']
  #allocation2 [shape = 's32[1,16,128]{2,1,0:T(8,128)}', space=vmem, size = 0x2000, scoped, tag = 'scratch operand']
  %s0 = inlined_call_operand.hbm [shape: f32[16,128], index: 0, kind: input, shape index: {}]
  %s1 = inlined_call_operand.hbm [shape: f32[16,128], index: 1, kind: output, shape index: {0}]
  %s2 = inlined_call_operand.hbm [shape: s32[1], index: 2, kind: output, shape index: {1}]
  %3 = xla_tuple %s1, %s2
  %s4 = sld [smem:[#allocation0]]
  $region37: #{tpu_custom_call.1} parent=0
    _
  %s6 = ssub.s32 1, %s4
  %s7 = scalar_select 0, %s6, %s4
  $region1: #{tpu_custom_call.1} parent=0
    #allocation3 [shape = 'u8[8192]{0}', space=vmem, size = 0x2000, scoped, tag = 'input window, operand 0, single buffered']
    #allocation4 [shape = 's32[1]{0}', space=sflag, size = 0x4, scoped, tag = 'scoped memory for tpu_custom_call.1']
    #allocation5 [shape = 's32[1]{0}', space=sflag, size = 0x4, scoped, tag = 'scoped memory for tpu_custom_call.1']
    #allocation6 [shape = 's32[1]{0}', space=sflag, size = 0x4, scoped, tag = 'scoped memory for tpu_custom_call.1']
    #allocation7 [shape = 'u8[8192]{0}', space=vmem, size = 0x2000, scoped, tag = 'output window, operand 0, single buffered']
    #allocation8 [shape = 'u8[512]{0}', space=smem, size = 0x200, scoped, tag = 'output window, operand 1, single buffered']
    %8 = vsyncpa [#allocation4], 0
    %9 = vsyncpa [#allocation5], 0
    %10 = vsyncpa [#allocation6], 0
    // Predicated region
    $region2: #{tpu_custom_call.1} parent=1 // pred_check
      _
    $region3: #{tpu_custom_call.1} parent=1 // pred_check_branch
      %12 = sbr.rel (0) target = $region5
    $region4: #{tpu_custom_call.1} parent=1 // pred_region
      %s14 = ssub.s32 256, 256
      %15 = vsyncadd [#allocation4], %s14
      %s16 = sshll.u32 [#allocation3], 4
      %s17 = int_to_ptr.vmem [resolvable:$true] %s16
      %22 = dma.hbm_to_vmem [thread:$0]  %s0, 256, %s17, [#allocation4], 128, 128, 8
    $region5: #{tpu_custom_call.1} parent=1 // pred_fallthru
      _
    // Predicated region
    $region6: #{tpu_custom_call.1} parent=1 // pred_check
      _
    $region7: #{tpu_custom_call.1} parent=1 // pred_check_branch
      %24 = sbr.rel (0) target = $region9
    $region8: #{tpu_custom_call.1} parent=1 // pred_region
      %25 = dma.done [#allocation4], 256
    $region9: #{tpu_custom_call.1} parent=1 // pred_fallthru
      _
    %v26 = vld [vmem:[#allocation3] sm:$0xff]
    %v27 = vld [vmem:[#allocation3 + $0x8] sm:$0xff]
    %vm28 = vcmp.lt.f32.partialorder %v26, 0.999
    %vm29 = vcmp.lt.f32.partialorder %v27, 0.999
    %v30 = vsel %vm28, %v26, 0.999
    %v31 = vsel %vm29, %v27, 0.999
    %32 = vst [vmem:[#allocation7] sm:$0xff] %v30
    %33 = vst [vmem:[#allocation7 + $0x8] sm:$0xff] %v31
    %vm36 = vcmp.lt.s32.totalorder %v30, 0
    %vm37 = vcmp.lt.s32.totalorder %v31, 0
    %v38 = vxor.u32 %v30, 2147483647
    %v39 = vxor.u32 %v31, 2147483647
    %v40 = vsel %vm36, %v38, %v30
    %v41 = vsel %vm37, %v39, %v31
    %s42 = smul.u32 0, 16
    %s43 = scalar_lea.vmem [#allocation2], %s42
    %44 = vst [vmem:[%s43] sm:$0xff] %v40
    %45 = vst [vmem:[%s43 + $0x8] sm:$0xff] %v41
    %p46 = scmp.eq.s32.totalorder 0, 0
    // Predicated region
    $region10: #{tpu_custom_call.1} parent=1 // pred_check
      %p47 = pneg %p46
    $region11: #{tpu_custom_call.1} parent=1 // pred_check_branch
      %49 = sbr.rel (%p47) target = $region13
    $region12: #{tpu_custom_call.1} parent=1 // pred_region
      loop: start=0, step=1, limit=32
      $region14: #{tpu_custom_call.1} parent=12 // loop_pre_header
        _
      $region15: #{tpu_custom_call.1} parent=12 // loop_header
        %s51 = sphi 0, %s55
        %p52 = scmp.ge.s32.totalorder %s51, 32
        %s56 = sphi 2147483648, %s90
      $region16: #{tpu_custom_call.1} parent=12 // loop_header_branch
        %54 = sbr.rel (%p52) target = $region20
      $region17: #{tpu_custom_call.1} parent=12 // loop_body
        %s57 = ssub.s32 31, %s51
        %p58 = scmp.eq.s32.totalorder %s57, 31
        %s59 = sshll.u32 1, %s57
        %s60 = scalar_select %p58, 2147483648, %s59
        %s61 = sadd.s32 %s56, %s60
        %v62 = vld [vmem:[#allocation2] sm:$0xff]
        %v63 = vld [vmem:[#allocation2 + $0x8] sm:$0xff]
        %v64 = vstv %s61
        %vm65 = vcmp.lt.s32.totalorder %v62, %v64
        %vm66 = vcmp.lt.s32.totalorder %v63, %v64
        %v67 = vsel %vm65, 1, 0
        %v68 = vsel %vm66, 1, 0
        %v69 = vadd.s32 %v67, %v68
        %v70 = vand.u32 %v69, 65535
        %v71 = vshrl.u32 %v69, 16
        %v72 = vcvt.s32.f32 %v70
        %v73 = vcvt.s32.f32 %v71
        %74 = vadd.xlane.f32.xlu0 %v72
        %v75 = vpop.xlane.xlu0 %74
        %76 = vadd.xlane.f32.xlu0 %v73
        %v77 = vpop.xlane.xlu0 %76
        %v78 = vcvt.f32.s32 %v75
        %v79 = vcvt.f32.s32 %v77
        %v80 = vshll.u32 %v79, 16
        %v81 = vadd.s32 %v80, %v78
        %v82 = vrot.slane %v81, 4
        %v83 = vadd.s32 %v81, %v82
        %v84 = vrot.slane %v83, 2
        %v85 = vadd.s32 %v83, %v84
        %v86 = vrot.slane %v85, 1
        %v87 = vadd.s32 %v85, %v86
        %s88 = vtos %v87
        %p89 = scmp.le.s32.totalorder %s88, 2045
        %s90 = scalar_select %p89, %s61, %s56
      $region18: #{tpu_custom_call.1} parent=12 // loop_footer
        %s55 = sadd.s32 1, %s51
      $region19: #{tpu_custom_call.1} parent=12 // loop_footer_branch
        %50 = sbr.rel target = $region15
      $region20: #{tpu_custom_call.1} parent=12 // loop_exit
        _
      %s91 = scalar_lea.smem [#allocation8], 0
      %92 = sst [smem:[%s91]] %s56
    $region13: #{tpu_custom_call.1} parent=1 // pred_fallthru
      _
    // Predicated region
    $region21: #{tpu_custom_call.1} parent=1 // pred_check
      _
    $region22: #{tpu_custom_call.1} parent=1 // pred_check_branch
      %94 = sbr.rel (0) target = $region24
    $region23: #{tpu_custom_call.1} parent=1 // pred_region
      %s96 = ssub.s32 256, 256
      %97 = vsyncadd [#allocation5], %s96
      %s98 = sshll.u32 [#allocation7], 4
      %s99 = int_to_ptr.vmem [resolvable:$true] %s98
      %104 = dma.vmem_to_hbm [thread:$0]  %s99, 256, %s1, [#allocation5], 128, 128, 8
    $region24: #{tpu_custom_call.1} parent=1 // pred_fallthru
      _
    // Predicated region
    $region25: #{tpu_custom_call.1} parent=1 // pred_check
      _
    $region26: #{tpu_custom_call.1} parent=1 // pred_check_branch
      %106 = sbr.rel (0) target = $region28
    $region27: #{tpu_custom_call.1} parent=1 // pred_region
      %s108 = ssub.s32 16, 16
      %109 = vsyncadd [#allocation6], %s108
      %112 = dma.smem_to_hbm [#allocation8], 16, %s2, [#allocation6]
    $region28: #{tpu_custom_call.1} parent=1 // pred_fallthru
      _
    // Predicated region
    $region29: #{tpu_custom_call.1} parent=1 // pred_check
      _
    $region30: #{tpu_custom_call.1} parent=1 // pred_check_branch
      %114 = sbr.rel (0) target = $region32
    $region31: #{tpu_custom_call.1} parent=1 // pred_region
      %115 = dma.done [#allocation5], 256
    $region32: #{tpu_custom_call.1} parent=1 // pred_fallthru
      _
    // Predicated region
    $region33: #{tpu_custom_call.1} parent=1 // pred_check
      _
    $region34: #{tpu_custom_call.1} parent=1 // pred_check_branch
      %117 = sbr.rel (0) target = $region36
    $region35: #{tpu_custom_call.1} parent=1 // pred_region
      %118 = dma.done [#allocation6], 16
    $region36: #{tpu_custom_call.1} parent=1 // pred_fallthru
      _
    %119 = sfence
    %120 = vsyncpa [#allocation4], 1
    %121 = vsyncpa [#allocation5], 1
    %122 = vsyncpa [#allocation6], 1

</llo_original>
